<compile_context>
chip_gen: v7x
topology: tpu7x:2x2x1
jax: 0.10.0
libtpu: 0.0.40
codegen_flags: <defaults>
</compile_context>

<pallas_src>
import math
from typing import NamedTuple

import jax
import jax.numpy as jnp
from jax.experimental import pallas as pl
from jax.experimental.pallas import tpu as pltpu

NEG_SLOPE = 0.01
LANE = 128  # TPU lane width; batch tiles are multiples of this for dense stores


def _round_up(x, m):
    return ((x + m - 1) // m) * m


def _leaky_relu(x):
    # For 0 < slope < 1, max(x, slope*x) == LeakyReLU: 2 VPU ops instead of 3.
    return jnp.maximum(x, NEG_SLOPE * x)


class ResNetDims(NamedTuple):
    in_features: int
    hidden_features: int
    out_features: int
    n_layers: int


# ----------------------------- packing (once) --------------------------------

def pack_params(params):
    """Pack per-layer (W^T (in,out), b (out,)) pairs ONCE at parameter-load time.

    Returns:
      w_slab: (L, H, H) f32, torch orientation (out, in), zero padded.
      b_slab: (L, H, 1) f32, zero padded.
      dims:   ResNetDims (static ints used to specialize the kernel).
    """
    in_f = params[0][0].shape[0]
    hid_f = params[0][0].shape[1]
    out_f = params[-1][0].shape[1]
    L = len(params)
    H = _round_up(max(in_f, hid_f, out_f), 8)  # sublane-aligned feature pad

    w_slab = jnp.zeros((L, H, H), jnp.float32)
    b_slab = jnp.zeros((L, H, 1), jnp.float32)
    for i, (w_t, b) in enumerate(params):
        n_in, n_out = w_t.shape
        w_slab = w_slab.at[i, :n_out, :n_in].set(w_t.T)  # (out, in) orientation
        b_slab = b_slab.at[i, :n_out, 0].set(b)
    return w_slab, b_slab, ResNetDims(in_f, hid_f, out_f, L)


# --------------------------------- kernel ------------------------------------

def _make_kernel(dims: ResNetDims):
    in_f, hid_f, out_f, L = dims
    n_res = (L - 2) // 2
    fan_in = [in_f] + [hid_f] * (L - 1)

    def kernel(x_ref, w_ref, b_ref, o_ref):
        # x_ref : (in_f, Bt)   batch on lanes (dense), features on sublanes
        # w_ref : (L, H, H)    resident packed weights, torch (out, in) layout
        # b_ref : (L, H, 1)    resident packed biases
        # o_ref : (out_f, Bt)  lane-dense output tile
        x = x_ref[...]

        def linear(i, h):
            # out[j, :] = sum_k W[j, k] * h[k, :] + b[j]
            # hidden=8 -> 8 broadcast-MACs on the VPU over dense (H, Bt) vregs.
            w = w_ref[i]                                # (H, H)
            acc = w[:, 0:1] * h[0:1, :]                 # (H,1)*(1,Bt) -> (H,Bt)
            for k in range(1, fan_in[i]):
                acc = acc + w[:, k:k + 1] * h[k:k + 1, :]
            return acc + b_ref[i]                       # + (H,1) bias broadcast

        h = _leaky_relu(linear(0, x))                   # Linear_first + LeakyReLU
        for r in range(n_res):                          # ResBlocks
            t = _leaky_relu(linear(1 + 2 * r, h))
            t = _leaky_relu(linear(2 + 2 * r, t))
            h = h + t
        out = linear(L - 1, h)                          # Linear_last (no act.)
        res = x[in_f - out_f:in_f, :]                   # residual[..., -out:]
        o_ref[...] = res + out[:out_f, :]

    return kernel


# -------------------------------- wrapper -------------------------------------

def resnet_forward(x, w_slab, b_slab, dims: ResNetDims, *, batch_tile=None):
    """x: (batch, in_features) f32 -> (batch, out_features) f32."""
    batch, in_f_x = x.shape
    in_f, hid_f, out_f, L = dims
    assert in_f_x == in_f
    assert out_f <= in_f, "residual slice requires out_features <= in_features"
    H = w_slab.shape[-1]

    # Batch tile: multiple of 128 lanes, capped at 2048 rows, targeting ~8 grid
    # steps on large batches (keeps both v7x TensorCores fed and the DMA/compute
    # pipeline full); tiny batches get a single small tile (no dead 2048-row work).
    if batch_tile is None:
        batch_tile = min(2048, max(LANE, _round_up(pl.cdiv(batch, 8), LANE)))
    batch_tile = _round_up(batch_tile, LANE)
    b_pad = _round_up(batch, batch_tile)

    # Lane-dense transposed input: only ~4*in_features bytes/row hit HBM.
    x_t = jnp.zeros((in_f, b_pad), jnp.float32).at[:, :batch].set(x.T)

    grid = (b_pad // batch_tile,)
    y_t = pl.pallas_call(
        _make_kernel(dims),
        out_shape=jax.ShapeDtypeStruct((out_f, b_pad), jnp.float32),
        grid=grid,
        in_specs=[
            pl.BlockSpec((in_f, batch_tile), lambda i: (0, i)),
            pl.BlockSpec((L, H, H), lambda i: (0, 0, 0)),  # resident in VMEM
            pl.BlockSpec((L, H, 1), lambda i: (0, 0, 0)),  # resident in VMEM
        ],
        out_specs=pl.BlockSpec((out_f, batch_tile), lambda i: (0, i)),
        compiler_params=pltpu.CompilerParams(
            dimension_semantics=("parallel",)),
    )(x_t, w_slab, b_slab)

    return y_t[:, :batch].T


# ----------------------------- init & reference -------------------------------

def _kaiming_normal_fan_in_leaky(key, out_f, in_f, a=0.01):
    # torch kaiming_normal_(a=0.01, mode='fan_in', nonlinearity='leaky_relu')
    gain = math.sqrt(2.0 / (1.0 + a * a))
    std = gain / math.sqrt(in_f)
    w = std * jax.random.normal(key, (out_f, in_f), dtype=jnp.float32)
    return w.T  # stored as (in, out)


def init_params(key, in_features=2, hidden_features=8, out_features=1, n_resblocks=2):
    """Matches the PyTorch module's initialization exactly."""
    keys = jax.random.split(key, 1 + n_resblocks)
    params = [(
        _kaiming_normal_fan_in_leaky(keys[0], hidden_features, in_features),
        jnp.zeros((hidden_features,), jnp.float32),
    )]
    for i in range(n_resblocks):
        params.append((
            _kaiming_normal_fan_in_leaky(keys[1 + i], hidden_features, hidden_features),
            jnp.zeros((hidden_features,), jnp.float32),
        ))
        params.append((
            jnp.zeros((hidden_features, hidden_features), jnp.float32),
            jnp.zeros((hidden_features,), jnp.float32),
        ))
    params.append((
        jnp.zeros((hidden_features, out_features), jnp.float32),
        jnp.zeros((out_features,), jnp.float32),
    ))
    return params


def random_params(key, in_features=2, hidden_features=8, out_features=1, n_resblocks=2):
    """Fully random params: exercises every layer (torch init zeros some weights)."""
    dims = [(in_features, hidden_features)]
    for _ in range(n_resblocks):
        dims += [(hidden_features, hidden_features), (hidden_features, hidden_features)]
    dims.append((hidden_features, out_features))
    params = []
    for d_in, d_out in dims:
        key, kw, kb = jax.random.split(key, 3)
        params.append((
            0.3 * jax.random.normal(kw, (d_in, d_out), dtype=jnp.float32),
            0.1 * jax.random.normal(kb, (d_out,), dtype=jnp.float32),
        ))
    return params


def reference_forward(x, params):
    """Plain-JAX reference replicating the PyTorch module semantics."""
    out_features = params[-1][0].shape[1]
    n_res = (len(params) - 2) // 2
    residual = x

    w, b = params[0]
    h = _leaky_relu(x @ w + b)
    for i in range(n_res):
        w1, b1 = params[1 + 2 * i]
        w2, b2 = params[2 + 2 * i]
        t = _leaky_relu(h @ w1 + b1)
        t = _leaky_relu(t @ w2 + b2)
        h = h + t
    wl, bl = params[-1]
    out = h @ wl + bl
    return residual[..., -out_features:] + out


if __name__ == "__main__":
    key = jax.random.PRNGKey(0)
    k_param, k_rand, k_x, k_x2 = jax.random.split(key, 4)

    in_features, hidden_features, out_features, n_resblocks = 2, 8, 1, 2

    # Case 1: torch-style init (zero last / second-resblock weights), batch=8.
    params = init_params(k_param, in_features, hidden_features, out_features, n_resblocks)
    w_slab, b_slab, dims = pack_params(params)        # packed once, reused per call
    x = jax.random.normal(k_x, (8, in_features), dtype=jnp.float32)
    y = jax.block_until_ready(resnet_forward(x, w_slab, b_slab, dims))
    y_ref = reference_forward(x, params)
    assert y.shape == (8, out_features)
    assert jnp.allclose(y, y_ref, atol=1e-5, rtol=1e-5), (y, y_ref)

    # Case 2: random params (data flows through every layer), ragged batch with
    # an explicit 128-row tile so the grid has >1 step (exercises pipelining,
    # row padding, and the residual path).
    params_r = random_params(k_rand, in_features, hidden_features, out_features, n_resblocks)
    w_slab_r, b_slab_r, dims_r = pack_params(params_r)
    x2 = jax.random.normal(k_x2, (200, in_features), dtype=jnp.float32)
    y2 = jax.block_until_ready(
        resnet_forward(x2, w_slab_r, b_slab_r, dims_r, batch_tile=128))
    y2_ref = reference_forward(x2, params_r)
    assert y2.shape == (200, out_features)
    assert jnp.allclose(y2, y2_ref, atol=1e-5, rtol=1e-5)

    print("KERNEL_OK")
</pallas_src>

<mosaic_0001>
module attributes {stable_mosaic.version = 11 : i64} {
  func.func @kernel(%arg0: i32, %arg1: memref<2x128xf32, #tpu.memory_space<vmem>>, %arg2: memref<6x8x8xf32, #tpu.memory_space<vmem>>, %arg3: memref<6x8x1xf32, #tpu.memory_space<vmem>>, %arg4: memref<1x128xf32, #tpu.memory_space<vmem>>) attributes {dimension_semantics = [#tpu.dimension_semantics<parallel>], iteration_bounds = array<i64: 1>, scalar_prefetch = 0 : i64, scratch_operands = 0 : i64, tpu.core_type = #tpu.core_type<tc>, window_params = [{transform_indices = @transform_0, window_bounds = array<i64: 2, 128>}, {pipeline_mode = #tpu.pipeline_mode<synchronous>, transform_indices = @transform_1, window_bounds = array<i64: 6, 8, 8>}, {pipeline_mode = #tpu.pipeline_mode<synchronous>, transform_indices = @transform_2, window_bounds = array<i64: 6, 8, 1>}, {transform_indices = @transform_3, window_bounds = array<i64: 1, 128>}]} {
    %c0 = arith.constant 0 : index
    %c0_0 = arith.constant 0 : index
    %0 = vector.load %arg1[%c0, %c0_0] : memref<2x128xf32, #tpu.memory_space<vmem>>, vector<2x128xf32>
    %c0_1 = arith.constant 0 : index
    %c0_2 = arith.constant 0 : index
    %c0_3 = arith.constant 0 : index
    %1 = vector.load %arg2[%c0_1, %c0_2, %c0_3] : memref<6x8x8xf32, #tpu.memory_space<vmem>>, vector<1x8x8xf32>
    %2 = vector.shape_cast %1 : vector<1x8x8xf32> to vector<8x8xf32>
    %3 = vector.extract_strided_slice %2 {offsets = [0, 0], sizes = [8, 1], strides = [1, 1]} : vector<8x8xf32> to vector<8x1xf32>
    %4 = vector.extract_strided_slice %0 {offsets = [0, 0], sizes = [1, 128], strides = [1, 1]} : vector<2x128xf32> to vector<1x128xf32>
    %5 = vector.broadcast %3 : vector<8x1xf32> to vector<8x128xf32>
    %6 = vector.broadcast %4 : vector<1x128xf32> to vector<8x128xf32>
    %7 = arith.mulf %5, %6 : vector<8x128xf32>
    %8 = vector.extract_strided_slice %2 {offsets = [0, 1], sizes = [8, 1], strides = [1, 1]} : vector<8x8xf32> to vector<8x1xf32>
    %9 = vector.extract_strided_slice %0 {offsets = [1, 0], sizes = [1, 128], strides = [1, 1]} : vector<2x128xf32> to vector<1x128xf32>
    %10 = vector.broadcast %8 : vector<8x1xf32> to vector<8x128xf32>
    %11 = vector.broadcast %9 : vector<1x128xf32> to vector<8x128xf32>
    %12 = arith.mulf %10, %11 : vector<8x128xf32>
    %13 = arith.addf %7, %12 : vector<8x128xf32>
    %c0_4 = arith.constant 0 : index
    %c0_5 = arith.constant 0 : index
    %c0_6 = arith.constant 0 : index
    %14 = vector.load %arg3[%c0_4, %c0_5, %c0_6] : memref<6x8x1xf32, #tpu.memory_space<vmem>>, vector<1x8x1xf32>
    %15 = vector.shape_cast %14 : vector<1x8x1xf32> to vector<8x1xf32>
    %16 = vector.broadcast %15 : vector<8x1xf32> to vector<8x128xf32>
    %17 = arith.addf %13, %16 : vector<8x128xf32>
    %cst = arith.constant 0.00999999977 : f32
    %18 = vector.broadcast %cst : f32 to vector<8x128xf32>
    %19 = arith.mulf %18, %17 : vector<8x128xf32>
    %20 = arith.maximumf %17, %19 : vector<8x128xf32>
    %c1 = arith.constant 1 : index
    %c0_7 = arith.constant 0 : index
    %c0_8 = arith.constant 0 : index
    %21 = vector.load %arg2[%c1, %c0_7, %c0_8] : memref<6x8x8xf32, #tpu.memory_space<vmem>>, vector<1x8x8xf32>
    %22 = vector.shape_cast %21 : vector<1x8x8xf32> to vector<8x8xf32>
    %23 = vector.extract_strided_slice %22 {offsets = [0, 0], sizes = [8, 1], strides = [1, 1]} : vector<8x8xf32> to vector<8x1xf32>
    %24 = vector.extract_strided_slice %20 {offsets = [0, 0], sizes = [1, 128], strides = [1, 1]} : vector<8x128xf32> to vector<1x128xf32>
    %25 = vector.broadcast %23 : vector<8x1xf32> to vector<8x128xf32>
    %26 = vector.broadcast %24 : vector<1x128xf32> to vector<8x128xf32>
    %27 = arith.mulf %25, %26 : vector<8x128xf32>
    %28 = vector.extract_strided_slice %22 {offsets = [0, 1], sizes = [8, 1], strides = [1, 1]} : vector<8x8xf32> to vector<8x1xf32>
    %29 = vector.extract_strided_slice %20 {offsets = [1, 0], sizes = [1, 128], strides = [1, 1]} : vector<8x128xf32> to vector<1x128xf32>
    %30 = vector.broadcast %28 : vector<8x1xf32> to vector<8x128xf32>
    %31 = vector.broadcast %29 : vector<1x128xf32> to vector<8x128xf32>
    %32 = arith.mulf %30, %31 : vector<8x128xf32>
    %33 = arith.addf %27, %32 : vector<8x128xf32>
    %34 = vector.extract_strided_slice %22 {offsets = [0, 2], sizes = [8, 1], strides = [1, 1]} : vector<8x8xf32> to vector<8x1xf32>
    %35 = vector.extract_strided_slice %20 {offsets = [2, 0], sizes = [1, 128], strides = [1, 1]} : vector<8x128xf32> to vector<1x128xf32>
    %36 = vector.broadcast %34 : vector<8x1xf32> to vector<8x128xf32>
    %37 = vector.broadcast %35 : vector<1x128xf32> to vector<8x128xf32>
    %38 = arith.mulf %36, %37 : vector<8x128xf32>
    %39 = arith.addf %33, %38 : vector<8x128xf32>
    %40 = vector.extract_strided_slice %22 {offsets = [0, 3], sizes = [8, 1], strides = [1, 1]} : vector<8x8xf32> to vector<8x1xf32>
    %41 = vector.extract_strided_slice %20 {offsets = [3, 0], sizes = [1, 128], strides = [1, 1]} : vector<8x128xf32> to vector<1x128xf32>
    %42 = vector.broadcast %40 : vector<8x1xf32> to vector<8x128xf32>
    %43 = vector.broadcast %41 : vector<1x128xf32> to vector<8x128xf32>
    %44 = arith.mulf %42, %43 : vector<8x128xf32>
    %45 = arith.addf %39, %44 : vector<8x128xf32>
    %46 = vector.extract_strided_slice %22 {offsets = [0, 4], sizes = [8, 1], strides = [1, 1]} : vector<8x8xf32> to vector<8x1xf32>
    %47 = vector.extract_strided_slice %20 {offsets = [4, 0], sizes = [1, 128], strides = [1, 1]} : vector<8x128xf32> to vector<1x128xf32>
    %48 = vector.broadcast %46 : vector<8x1xf32> to vector<8x128xf32>
    %49 = vector.broadcast %47 : vector<1x128xf32> to vector<8x128xf32>
    %50 = arith.mulf %48, %49 : vector<8x128xf32>
    %51 = arith.addf %45, %50 : vector<8x128xf32>
    %52 = vector.extract_strided_slice %22 {offsets = [0, 5], sizes = [8, 1], strides = [1, 1]} : vector<8x8xf32> to vector<8x1xf32>
    %53 = vector.extract_strided_slice %20 {offsets = [5, 0], sizes = [1, 128], strides = [1, 1]} : vector<8x128xf32> to vector<1x128xf32>
    %54 = vector.broadcast %52 : vector<8x1xf32> to vector<8x128xf32>
    %55 = vector.broadcast %53 : vector<1x128xf32> to vector<8x128xf32>
    %56 = arith.mulf %54, %55 : vector<8x128xf32>
    %57 = arith.addf %51, %56 : vector<8x128xf32>
    %58 = vector.extract_strided_slice %22 {offsets = [0, 6], sizes = [8, 1], strides = [1, 1]} : vector<8x8xf32> to vector<8x1xf32>
    %59 = vector.extract_strided_slice %20 {offsets = [6, 0], sizes = [1, 128], strides = [1, 1]} : vector<8x128xf32> to vector<1x128xf32>
    %60 = vector.broadcast %58 : vector<8x1xf32> to vector<8x128xf32>
    %61 = vector.broadcast %59 : vector<1x128xf32> to vector<8x128xf32>
    %62 = arith.mulf %60, %61 : vector<8x128xf32>
    %63 = arith.addf %57, %62 : vector<8x128xf32>
    %64 = vector.extract_strided_slice %22 {offsets = [0, 7], sizes = [8, 1], strides = [1, 1]} : vector<8x8xf32> to vector<8x1xf32>
    %65 = vector.extract_strided_slice %20 {offsets = [7, 0], sizes = [1, 128], strides = [1, 1]} : vector<8x128xf32> to vector<1x128xf32>
    %66 = vector.broadcast %64 : vector<8x1xf32> to vector<8x128xf32>
    %67 = vector.broadcast %65 : vector<1x128xf32> to vector<8x128xf32>
    %68 = arith.mulf %66, %67 : vector<8x128xf32>
    %69 = arith.addf %63, %68 : vector<8x128xf32>
    %c1_9 = arith.constant 1 : index
    %c0_10 = arith.constant 0 : index
    %c0_11 = arith.constant 0 : index
    %70 = vector.load %arg3[%c1_9, %c0_10, %c0_11] : memref<6x8x1xf32, #tpu.memory_space<vmem>>, vector<1x8x1xf32>
    %71 = vector.shape_cast %70 : vector<1x8x1xf32> to vector<8x1xf32>
    %72 = vector.broadcast %71 : vector<8x1xf32> to vector<8x128xf32>
    %73 = arith.addf %69, %72 : vector<8x128xf32>
    %cst_12 = arith.constant 0.00999999977 : f32
    %74 = vector.broadcast %cst_12 : f32 to vector<8x128xf32>
    %75 = arith.mulf %74, %73 : vector<8x128xf32>
    %76 = arith.maximumf %73, %75 : vector<8x128xf32>
    %c2 = arith.constant 2 : index
    %c0_13 = arith.constant 0 : index
    %c0_14 = arith.constant 0 : index
    %77 = vector.load %arg2[%c2, %c0_13, %c0_14] : memref<6x8x8xf32, #tpu.memory_space<vmem>>, vector<1x8x8xf32>
    %78 = vector.shape_cast %77 : vector<1x8x8xf32> to vector<8x8xf32>
    %79 = vector.extract_strided_slice %78 {offsets = [0, 0], sizes = [8, 1], strides = [1, 1]} : vector<8x8xf32> to vector<8x1xf32>
    %80 = vector.extract_strided_slice %76 {offsets = [0, 0], sizes = [1, 128], strides = [1, 1]} : vector<8x128xf32> to vector<1x128xf32>
    %81 = vector.broadcast %79 : vector<8x1xf32> to vector<8x128xf32>
    %82 = vector.broadcast %80 : vector<1x128xf32> to vector<8x128xf32>
    %83 = arith.mulf %81, %82 : vector<8x128xf32>
    %84 = vector.extract_strided_slice %78 {offsets = [0, 1], sizes = [8, 1], strides = [1, 1]} : vector<8x8xf32> to vector<8x1xf32>
    %85 = vector.extract_strided_slice %76 {offsets = [1, 0], sizes = [1, 128], strides = [1, 1]} : vector<8x128xf32> to vector<1x128xf32>
    %86 = vector.broadcast %84 : vector<8x1xf32> to vector<8x128xf32>
    %87 = vector.broadcast %85 : vector<1x128xf32> to vector<8x128xf32>
    %88 = arith.mulf %86, %87 : vector<8x128xf32>
    %89 = arith.addf %83, %88 : vector<8x128xf32>
    %90 = vector.extract_strided_slice %78 {offsets = [0, 2], sizes = [8, 1], strides = [1, 1]} : vector<8x8xf32> to vector<8x1xf32>
    %91 = vector.extract_strided_slice %76 {offsets = [2, 0], sizes = [1, 128], strides = [1, 1]} : vector<8x128xf32> to vector<1x128xf32>
    %92 = vector.broadcast %90 : vector<8x1xf32> to vector<8x128xf32>
    %93 = vector.broadcast %91 : vector<1x128xf32> to vector<8x128xf32>
    %94 = arith.mulf %92, %93 : vector<8x128xf32>
    %95 = arith.addf %89, %94 : vector<8x128xf32>
    %96 = vector.extract_strided_slice %78 {offsets = [0, 3], sizes = [8, 1], strides = [1, 1]} : vector<8x8xf32> to vector<8x1xf32>
    %97 = vector.extract_strided_slice %76 {offsets = [3, 0], sizes = [1, 128], strides = [1, 1]} : vector<8x128xf32> to vector<1x128xf32>
    %98 = vector.broadcast %96 : vector<8x1xf32> to vector<8x128xf32>
    %99 = vector.broadcast %97 : vector<1x128xf32> to vector<8x128xf32>
    %100 = arith.mulf %98, %99 : vector<8x128xf32>
    %101 = arith.addf %95, %100 : vector<8x128xf32>
    %102 = vector.extract_strided_slice %78 {offsets = [0, 4], sizes = [8, 1], strides = [1, 1]} : vector<8x8xf32> to vector<8x1xf32>
    %103 = vector.extract_strided_slice %76 {offsets = [4, 0], sizes = [1, 128], strides = [1, 1]} : vector<8x128xf32> to vector<1x128xf32>
    %104 = vector.broadcast %102 : vector<8x1xf32> to vector<8x128xf32>
    %105 = vector.broadcast %103 : vector<1x128xf32> to vector<8x128xf32>
    %106 = arith.mulf %104, %105 : vector<8x128xf32>
    %107 = arith.addf %101, %106 : vector<8x128xf32>
    %108 = vector.extract_strided_slice %78 {offsets = [0, 5], sizes = [8, 1], strides = [1, 1]} : vector<8x8xf32> to vector<8x1xf32>
    %109 = vector.extract_strided_slice %76 {offsets = [5, 0], sizes = [1, 128], strides = [1, 1]} : vector<8x128xf32> to vector<1x128xf32>
    %110 = vector.broadcast %108 : vector<8x1xf32> to vector<8x128xf32>
    %111 = vector.broadcast %109 : vector<1x128xf32> to vector<8x128xf32>
    %112 = arith.mulf %110, %111 : vector<8x128xf32>
    %113 = arith.addf %107, %112 : vector<8x128xf32>
    %114 = vector.extract_strided_slice %78 {offsets = [0, 6], sizes = [8, 1], strides = [1, 1]} : vector<8x8xf32> to vector<8x1xf32>
    %115 = vector.extract_strided_slice %76 {offsets = [6, 0], sizes = [1, 128], strides = [1, 1]} : vector<8x128xf32> to vector<1x128xf32>
    %116 = vector.broadcast %114 : vector<8x1xf32> to vector<8x128xf32>
    %117 = vector.broadcast %115 : vector<1x128xf32> to vector<8x128xf32>
    %118 = arith.mulf %116, %117 : vector<8x128xf32>
    %119 = arith.addf %113, %118 : vector<8x128xf32>
    %120 = vector.extract_strided_slice %78 {offsets = [0, 7], sizes = [8, 1], strides = [1, 1]} : vector<8x8xf32> to vector<8x1xf32>
    %121 = vector.extract_strided_slice %76 {offsets = [7, 0], sizes = [1, 128], strides = [1, 1]} : vector<8x128xf32> to vector<1x128xf32>
    %122 = vector.broadcast %120 : vector<8x1xf32> to vector<8x128xf32>
    %123 = vector.broadcast %121 : vector<1x128xf32> to vector<8x128xf32>
    %124 = arith.mulf %122, %123 : vector<8x128xf32>
    %125 = arith.addf %119, %124 : vector<8x128xf32>
    %c2_15 = arith.constant 2 : index
    %c0_16 = arith.constant 0 : index
    %c0_17 = arith.constant 0 : index
    %126 = vector.load %arg3[%c2_15, %c0_16, %c0_17] : memref<6x8x1xf32, #tpu.memory_space<vmem>>, vector<1x8x1xf32>
    %127 = vector.shape_cast %126 : vector<1x8x1xf32> to vector<8x1xf32>
    %128 = vector.broadcast %127 : vector<8x1xf32> to vector<8x128xf32>
    %129 = arith.addf %125, %128 : vector<8x128xf32>
    %cst_18 = arith.constant 0.00999999977 : f32
    %130 = vector.broadcast %cst_18 : f32 to vector<8x128xf32>
    %131 = arith.mulf %130, %129 : vector<8x128xf32>
    %132 = arith.maximumf %129, %131 : vector<8x128xf32>
    %133 = arith.addf %20, %132 : vector<8x128xf32>
    %c3 = arith.constant 3 : index
    %c0_19 = arith.constant 0 : index
    %c0_20 = arith.constant 0 : index
    %134 = vector.load %arg2[%c3, %c0_19, %c0_20] : memref<6x8x8xf32, #tpu.memory_space<vmem>>, vector<1x8x8xf32>
    %135 = vector.shape_cast %134 : vector<1x8x8xf32> to vector<8x8xf32>
    %136 = vector.extract_strided_slice %135 {offsets = [0, 0], sizes = [8, 1], strides = [1, 1]} : vector<8x8xf32> to vector<8x1xf32>
    %137 = vector.extract_strided_slice %133 {offsets = [0, 0], sizes = [1, 128], strides = [1, 1]} : vector<8x128xf32> to vector<1x128xf32>
    %138 = vector.broadcast %136 : vector<8x1xf32> to vector<8x128xf32>
    %139 = vector.broadcast %137 : vector<1x128xf32> to vector<8x128xf32>
    %140 = arith.mulf %138, %139 : vector<8x128xf32>
    %141 = vector.extract_strided_slice %135 {offsets = [0, 1], sizes = [8, 1], strides = [1, 1]} : vector<8x8xf32> to vector<8x1xf32>
    %142 = vector.extract_strided_slice %133 {offsets = [1, 0], sizes = [1, 128], strides = [1, 1]} : vector<8x128xf32> to vector<1x128xf32>
    %143 = vector.broadcast %141 : vector<8x1xf32> to vector<8x128xf32>
    %144 = vector.broadcast %142 : vector<1x128xf32> to vector<8x128xf32>
    %145 = arith.mulf %143, %144 : vector<8x128xf32>
    %146 = arith.addf %140, %145 : vector<8x128xf32>
    %147 = vector.extract_strided_slice %135 {offsets = [0, 2], sizes = [8, 1], strides = [1, 1]} : vector<8x8xf32> to vector<8x1xf32>
    %148 = vector.extract_strided_slice %133 {offsets = [2, 0], sizes = [1, 128], strides = [1, 1]} : vector<8x128xf32> to vector<1x128xf32>
    %149 = vector.broadcast %147 : vector<8x1xf32> to vector<8x128xf32>
    %150 = vector.broadcast %148 : vector<1x128xf32> to vector<8x128xf32>
    %151 = arith.mulf %149, %150 : vector<8x128xf32>
    %152 = arith.addf %146, %151 : vector<8x128xf32>
    %153 = vector.extract_strided_slice %135 {offsets = [0, 3], sizes = [8, 1], strides = [1, 1]} : vector<8x8xf32> to vector<8x1xf32>
    %154 = vector.extract_strided_slice %133 {offsets = [3, 0], sizes = [1, 128], strides = [1, 1]} : vector<8x128xf32> to vector<1x128xf32>
    %155 = vector.broadcast %153 : vector<8x1xf32> to vector<8x128xf32>
    %156 = vector.broadcast %154 : vector<1x128xf32> to vector<8x128xf32>
    %157 = arith.mulf %155, %156 : vector<8x128xf32>
    %158 = arith.addf %152, %157 : vector<8x128xf32>
    %159 = vector.extract_strided_slice %135 {offsets = [0, 4], sizes = [8, 1], strides = [1, 1]} : vector<8x8xf32> to vector<8x1xf32>
    %160 = vector.extract_strided_slice %133 {offsets = [4, 0], sizes = [1, 128], strides = [1, 1]} : vector<8x128xf32> to vector<1x128xf32>
    %161 = vector.broadcast %159 : vector<8x1xf32> to vector<8x128xf32>
    %162 = vector.broadcast %160 : vector<1x128xf32> to vector<8x128xf32>
    %163 = arith.mulf %161, %162 : vector<8x128xf32>
    %164 = arith.addf %158, %163 : vector<8x128xf32>
    %165 = vector.extract_strided_slice %135 {offsets = [0, 5], sizes = [8, 1], strides = [1, 1]} : vector<8x8xf32> to vector<8x1xf32>
    %166 = vector.extract_strided_slice %133 {offsets = [5, 0], sizes = [1, 128], strides = [1, 1]} : vector<8x128xf32> to vector<1x128xf32>
    %167 = vector.broadcast %165 : vector<8x1xf32> to vector<8x128xf32>
    %168 = vector.broadcast %166 : vector<1x128xf32> to vector<8x128xf32>
    %169 = arith.mulf %167, %168 : vector<8x128xf32>
    %170 = arith.addf %164, %169 : vector<8x128xf32>
    %171 = vector.extract_strided_slice %135 {offsets = [0, 6], sizes = [8, 1], strides = [1, 1]} : vector<8x8xf32> to vector<8x1xf32>
    %172 = vector.extract_strided_slice %133 {offsets = [6, 0], sizes = [1, 128], strides = [1, 1]} : vector<8x128xf32> to vector<1x128xf32>
    %173 = vector.broadcast %171 : vector<8x1xf32> to vector<8x128xf32>
    %174 = vector.broadcast %172 : vector<1x128xf32> to vector<8x128xf32>
    %175 = arith.mulf %173, %174 : vector<8x128xf32>
    %176 = arith.addf %170, %175 : vector<8x128xf32>
    %177 = vector.extract_strided_slice %135 {offsets = [0, 7], sizes = [8, 1], strides = [1, 1]} : vector<8x8xf32> to vector<8x1xf32>
    %178 = vector.extract_strided_slice %133 {offsets = [7, 0], sizes = [1, 128], strides = [1, 1]} : vector<8x128xf32> to vector<1x128xf32>
    %179 = vector.broadcast %177 : vector<8x1xf32> to vector<8x128xf32>
    %180 = vector.broadcast %178 : vector<1x128xf32> to vector<8x128xf32>
    %181 = arith.mulf %179, %180 : vector<8x128xf32>
    %182 = arith.addf %176, %181 : vector<8x128xf32>
    %c3_21 = arith.constant 3 : index
    %c0_22 = arith.constant 0 : index
    %c0_23 = arith.constant 0 : index
    %183 = vector.load %arg3[%c3_21, %c0_22, %c0_23] : memref<6x8x1xf32, #tpu.memory_space<vmem>>, vector<1x8x1xf32>
    %184 = vector.shape_cast %183 : vector<1x8x1xf32> to vector<8x1xf32>
    %185 = vector.broadcast %184 : vector<8x1xf32> to vector<8x128xf32>
    %186 = arith.addf %182, %185 : vector<8x128xf32>
    %cst_24 = arith.constant 0.00999999977 : f32
    %187 = vector.broadcast %cst_24 : f32 to vector<8x128xf32>
    %188 = arith.mulf %187, %186 : vector<8x128xf32>
    %189 = arith.maximumf %186, %188 : vector<8x128xf32>
    %c4 = arith.constant 4 : index
    %c0_25 = arith.constant 0 : index
    %c0_26 = arith.constant 0 : index
    %190 = vector.load %arg2[%c4, %c0_25, %c0_26] : memref<6x8x8xf32, #tpu.memory_space<vmem>>, vector<1x8x8xf32>
    %191 = vector.shape_cast %190 : vector<1x8x8xf32> to vector<8x8xf32>
    %192 = vector.extract_strided_slice %191 {offsets = [0, 0], sizes = [8, 1], strides = [1, 1]} : vector<8x8xf32> to vector<8x1xf32>
    %193 = vector.extract_strided_slice %189 {offsets = [0, 0], sizes = [1, 128], strides = [1, 1]} : vector<8x128xf32> to vector<1x128xf32>
    %194 = vector.broadcast %192 : vector<8x1xf32> to vector<8x128xf32>
    %195 = vector.broadcast %193 : vector<1x128xf32> to vector<8x128xf32>
    %196 = arith.mulf %194, %195 : vector<8x128xf32>
    %197 = vector.extract_strided_slice %191 {offsets = [0, 1], sizes = [8, 1], strides = [1, 1]} : vector<8x8xf32> to vector<8x1xf32>
    %198 = vector.extract_strided_slice %189 {offsets = [1, 0], sizes = [1, 128], strides = [1, 1]} : vector<8x128xf32> to vector<1x128xf32>
    %199 = vector.broadcast %197 : vector<8x1xf32> to vector<8x128xf32>
    %200 = vector.broadcast %198 : vector<1x128xf32> to vector<8x128xf32>
    %201 = arith.mulf %199, %200 : vector<8x128xf32>
    %202 = arith.addf %196, %201 : vector<8x128xf32>
    %203 = vector.extract_strided_slice %191 {offsets = [0, 2], sizes = [8, 1], strides = [1, 1]} : vector<8x8xf32> to vector<8x1xf32>
    %204 = vector.extract_strided_slice %189 {offsets = [2, 0], sizes = [1, 128], strides = [1, 1]} : vector<8x128xf32> to vector<1x128xf32>
    %205 = vector.broadcast %203 : vector<8x1xf32> to vector<8x128xf32>
    %206 = vector.broadcast %204 : vector<1x128xf32> to vector<8x128xf32>
    %207 = arith.mulf %205, %206 : vector<8x128xf32>
    %208 = arith.addf %202, %207 : vector<8x128xf32>
    %209 = vector.extract_strided_slice %191 {offsets = [0, 3], sizes = [8, 1], strides = [1, 1]} : vector<8x8xf32> to vector<8x1xf32>
    %210 = vector.extract_strided_slice %189 {offsets = [3, 0], sizes = [1, 128], strides = [1, 1]} : vector<8x128xf32> to vector<1x128xf32>
    %211 = vector.broadcast %209 : vector<8x1xf32> to vector<8x128xf32>
    %212 = vector.broadcast %210 : vector<1x128xf32> to vector<8x128xf32>
    %213 = arith.mulf %211, %212 : vector<8x128xf32>
    %214 = arith.addf %208, %213 : vector<8x128xf32>
    %215 = vector.extract_strided_slice %191 {offsets = [0, 4], sizes = [8, 1], strides = [1, 1]} : vector<8x8xf32> to vector<8x1xf32>
    %216 = vector.extract_strided_slice %189 {offsets = [4, 0], sizes = [1, 128], strides = [1, 1]} : vector<8x128xf32> to vector<1x128xf32>
    %217 = vector.broadcast %215 : vector<8x1xf32> to vector<8x128xf32>
    %218 = vector.broadcast %216 : vector<1x128xf32> to vector<8x128xf32>
    %219 = arith.mulf %217, %218 : vector<8x128xf32>
    %220 = arith.addf %214, %219 : vector<8x128xf32>
    %221 = vector.extract_strided_slice %191 {offsets = [0, 5], sizes = [8, 1], strides = [1, 1]} : vector<8x8xf32> to vector<8x1xf32>
    %222 = vector.extract_strided_slice %189 {offsets = [5, 0], sizes = [1, 128], strides = [1, 1]} : vector<8x128xf32> to vector<1x128xf32>
    %223 = vector.broadcast %221 : vector<8x1xf32> to vector<8x128xf32>
    %224 = vector.broadcast %222 : vector<1x128xf32> to vector<8x128xf32>
    %225 = arith.mulf %223, %224 : vector<8x128xf32>
    %226 = arith.addf %220, %225 : vector<8x128xf32>
    %227 = vector.extract_strided_slice %191 {offsets = [0, 6], sizes = [8, 1], strides = [1, 1]} : vector<8x8xf32> to vector<8x1xf32>
    %228 = vector.extract_strided_slice %189 {offsets = [6, 0], sizes = [1, 128], strides = [1, 1]} : vector<8x128xf32> to vector<1x128xf32>
    %229 = vector.broadcast %227 : vector<8x1xf32> to vector<8x128xf32>
    %230 = vector.broadcast %228 : vector<1x128xf32> to vector<8x128xf32>
    %231 = arith.mulf %229, %230 : vector<8x128xf32>
    %232 = arith.addf %226, %231 : vector<8x128xf32>
    %233 = vector.extract_strided_slice %191 {offsets = [0, 7], sizes = [8, 1], strides = [1, 1]} : vector<8x8xf32> to vector<8x1xf32>
    %234 = vector.extract_strided_slice %189 {offsets = [7, 0], sizes = [1, 128], strides = [1, 1]} : vector<8x128xf32> to vector<1x128xf32>
    %235 = vector.broadcast %233 : vector<8x1xf32> to vector<8x128xf32>
    %236 = vector.broadcast %234 : vector<1x128xf32> to vector<8x128xf32>
    %237 = arith.mulf %235, %236 : vector<8x128xf32>
    %238 = arith.addf %232, %237 : vector<8x128xf32>
    %c4_27 = arith.constant 4 : index
    %c0_28 = arith.constant 0 : index
    %c0_29 = arith.constant 0 : index
    %239 = vector.load %arg3[%c4_27, %c0_28, %c0_29] : memref<6x8x1xf32, #tpu.memory_space<vmem>>, vector<1x8x1xf32>
    %240 = vector.shape_cast %239 : vector<1x8x1xf32> to vector<8x1xf32>
    %241 = vector.broadcast %240 : vector<8x1xf32> to vector<8x128xf32>
    %242 = arith.addf %238, %241 : vector<8x128xf32>
    %cst_30 = arith.constant 0.00999999977 : f32
    %243 = vector.broadcast %cst_30 : f32 to vector<8x128xf32>
    %244 = arith.mulf %243, %242 : vector<8x128xf32>
    %245 = arith.maximumf %242, %244 : vector<8x128xf32>
    %246 = arith.addf %133, %245 : vector<8x128xf32>
    %c5 = arith.constant 5 : index
    %c0_31 = arith.constant 0 : index
    %c0_32 = arith.constant 0 : index
    %247 = vector.load %arg2[%c5, %c0_31, %c0_32] : memref<6x8x8xf32, #tpu.memory_space<vmem>>, vector<1x8x8xf32>
    %248 = vector.shape_cast %247 : vector<1x8x8xf32> to vector<8x8xf32>
    %249 = vector.extract_strided_slice %248 {offsets = [0, 0], sizes = [8, 1], strides = [1, 1]} : vector<8x8xf32> to vector<8x1xf32>
    %250 = vector.extract_strided_slice %246 {offsets = [0, 0], sizes = [1, 128], strides = [1, 1]} : vector<8x128xf32> to vector<1x128xf32>
    %251 = vector.broadcast %249 : vector<8x1xf32> to vector<8x128xf32>
    %252 = vector.broadcast %250 : vector<1x128xf32> to vector<8x128xf32>
    %253 = arith.mulf %251, %252 : vector<8x128xf32>
    %254 = vector.extract_strided_slice %248 {offsets = [0, 1], sizes = [8, 1], strides = [1, 1]} : vector<8x8xf32> to vector<8x1xf32>
    %255 = vector.extract_strided_slice %246 {offsets = [1, 0], sizes = [1, 128], strides = [1, 1]} : vector<8x128xf32> to vector<1x128xf32>
    %256 = vector.broadcast %254 : vector<8x1xf32> to vector<8x128xf32>
    %257 = vector.broadcast %255 : vector<1x128xf32> to vector<8x128xf32>
    %258 = arith.mulf %256, %257 : vector<8x128xf32>
    %259 = arith.addf %253, %258 : vector<8x128xf32>
    %260 = vector.extract_strided_slice %248 {offsets = [0, 2], sizes = [8, 1], strides = [1, 1]} : vector<8x8xf32> to vector<8x1xf32>
    %261 = vector.extract_strided_slice %246 {offsets = [2, 0], sizes = [1, 128], strides = [1, 1]} : vector<8x128xf32> to vector<1x128xf32>
    %262 = vector.broadcast %260 : vector<8x1xf32> to vector<8x128xf32>
    %263 = vector.broadcast %261 : vector<1x128xf32> to vector<8x128xf32>
    %264 = arith.mulf %262, %263 : vector<8x128xf32>
    %265 = arith.addf %259, %264 : vector<8x128xf32>
    %266 = vector.extract_strided_slice %248 {offsets = [0, 3], sizes = [8, 1], strides = [1, 1]} : vector<8x8xf32> to vector<8x1xf32>
    %267 = vector.extract_strided_slice %246 {offsets = [3, 0], sizes = [1, 128], strides = [1, 1]} : vector<8x128xf32> to vector<1x128xf32>
    %268 = vector.broadcast %266 : vector<8x1xf32> to vector<8x128xf32>
    %269 = vector.broadcast %267 : vector<1x128xf32> to vector<8x128xf32>
    %270 = arith.mulf %268, %269 : vector<8x128xf32>
    %271 = arith.addf %265, %270 : vector<8x128xf32>
    %272 = vector.extract_strided_slice %248 {offsets = [0, 4], sizes = [8, 1], strides = [1, 1]} : vector<8x8xf32> to vector<8x1xf32>
    %273 = vector.extract_strided_slice %246 {offsets = [4, 0], sizes = [1, 128], strides = [1, 1]} : vector<8x128xf32> to vector<1x128xf32>
    %274 = vector.broadcast %272 : vector<8x1xf32> to vector<8x128xf32>
    %275 = vector.broadcast %273 : vector<1x128xf32> to vector<8x128xf32>
    %276 = arith.mulf %274, %275 : vector<8x128xf32>
    %277 = arith.addf %271, %276 : vector<8x128xf32>
    %278 = vector.extract_strided_slice %248 {offsets = [0, 5], sizes = [8, 1], strides = [1, 1]} : vector<8x8xf32> to vector<8x1xf32>
    %279 = vector.extract_strided_slice %246 {offsets = [5, 0], sizes = [1, 128], strides = [1, 1]} : vector<8x128xf32> to vector<1x128xf32>
    %280 = vector.broadcast %278 : vector<8x1xf32> to vector<8x128xf32>
    %281 = vector.broadcast %279 : vector<1x128xf32> to vector<8x128xf32>
    %282 = arith.mulf %280, %281 : vector<8x128xf32>
    %283 = arith.addf %277, %282 : vector<8x128xf32>
    %284 = vector.extract_strided_slice %248 {offsets = [0, 6], sizes = [8, 1], strides = [1, 1]} : vector<8x8xf32> to vector<8x1xf32>
    %285 = vector.extract_strided_slice %246 {offsets = [6, 0], sizes = [1, 128], strides = [1, 1]} : vector<8x128xf32> to vector<1x128xf32>
    %286 = vector.broadcast %284 : vector<8x1xf32> to vector<8x128xf32>
    %287 = vector.broadcast %285 : vector<1x128xf32> to vector<8x128xf32>
    %288 = arith.mulf %286, %287 : vector<8x128xf32>
    %289 = arith.addf %283, %288 : vector<8x128xf32>
    %290 = vector.extract_strided_slice %248 {offsets = [0, 7], sizes = [8, 1], strides = [1, 1]} : vector<8x8xf32> to vector<8x1xf32>
    %291 = vector.extract_strided_slice %246 {offsets = [7, 0], sizes = [1, 128], strides = [1, 1]} : vector<8x128xf32> to vector<1x128xf32>
    %292 = vector.broadcast %290 : vector<8x1xf32> to vector<8x128xf32>
    %293 = vector.broadcast %291 : vector<1x128xf32> to vector<8x128xf32>
    %294 = arith.mulf %292, %293 : vector<8x128xf32>
    %295 = arith.addf %289, %294 : vector<8x128xf32>
    %c5_33 = arith.constant 5 : index
    %c0_34 = arith.constant 0 : index
    %c0_35 = arith.constant 0 : index
    %296 = vector.load %arg3[%c5_33, %c0_34, %c0_35] : memref<6x8x1xf32, #tpu.memory_space<vmem>>, vector<1x8x1xf32>
    %297 = vector.shape_cast %296 : vector<1x8x1xf32> to vector<8x1xf32>
    %298 = vector.broadcast %297 : vector<8x1xf32> to vector<8x128xf32>
    %299 = arith.addf %295, %298 : vector<8x128xf32>
    %300 = vector.extract_strided_slice %0 {offsets = [1, 0], sizes = [1, 128], strides = [1, 1]} : vector<2x128xf32> to vector<1x128xf32>
    %301 = vector.extract_strided_slice %299 {offsets = [0, 0], sizes = [1, 128], strides = [1, 1]} : vector<8x128xf32> to vector<1x128xf32>
    %302 = arith.addf %300, %301 : vector<1x128xf32>
    %c0_36 = arith.constant 0 : index
    %c0_37 = arith.constant 0 : index
    %303 = vector.load %arg4[%c0_36, %c0_37] : memref<1x128xf32, #tpu.memory_space<vmem>>, vector<1x128xf32>
    tpu.vector_store %arg4[%c0_36, %c0_37], %302 {strides = array<i32>} : memref<1x128xf32, #tpu.memory_space<vmem>>, vector<1x128xf32>,
    return
  }
  func.func @transform_0(%arg0: i32) -> (i32, i32) {
    %c0_i32 = arith.constant 0 : i32
    %c0_i32_0 = arith.constant 0 : i32
    return %c0_i32, %arg0 : i32, i32
  }
  func.func @transform_1(%arg0: i32) -> (i32, i32, i32) {
    %c0_i32 = arith.constant 0 : i32
    %c0_i32_0 = arith.constant 0 : i32
    %c0_i32_1 = arith.constant 0 : i32
    %c0_i32_2 = arith.constant 0 : i32
    return %c0_i32, %c0_i32_0, %c0_i32_1 : i32, i32, i32
  }
  func.func @transform_2(%arg0: i32) -> (i32, i32, i32) {
    %c0_i32 = arith.constant 0 : i32
    %c0_i32_0 = arith.constant 0 : i32
    %c0_i32_1 = arith.constant 0 : i32
    %c0_i32_2 = arith.constant 0 : i32
    return %c0_i32, %c0_i32_0, %c0_i32_1 : i32, i32, i32
  }
  func.func @transform_3(%arg0: i32) -> (i32, i32) {
    %c0_i32 = arith.constant 0 : i32
    %c0_i32_0 = arith.constant 0 : i32
    return %c0_i32, %arg0 : i32, i32
  }
}

</mosaic_0001>

<llo_original>
// kernel: tpu_custom_call.1
$region0: #{tpu_custom_call.1}
  #allocation0 [shape = 'u32[]', space=smem, size = 0x4, offset = 0x4, fixed_abs, tag = 'smem constant byte address 0x4 - core index']
  #allocation1 [shape = 'u32[144,128]{1,0:T(1,128)}', space=vmem, size = 0x12000, scoped, tag = 'internal scratch']
  %s0 = inlined_call_operand.vmem [shape: f32[2,128], index: 0, kind: input, shape index: {}]
  %s1 = inlined_call_operand.vmem [shape: f32[6,8,8], index: 1, kind: input, shape index: {}]
  %s2 = inlined_call_operand.vmem [shape: f32[6,8,1], index: 2, kind: input, shape index: {}]
  %s3 = inlined_call_operand.hbm [shape: f32[1,128], index: 3, kind: output, shape index: {}]
  %s4 = sld [smem:[#allocation0]]
  $region22: #{tpu_custom_call.1} parent=0
    _
  %s6 = ssub.s32 1, %s4
  %s7 = scalar_select 0, %s6, %s4
  $region1: #{tpu_custom_call.1} parent=0
    #allocation2 [shape = 'u8[512]{0}', space=vmem, size = 0x400, scoped, tag = 'output window, operand 0, single buffered']
    #allocation3 [shape = 's32[1]{0}', space=sflag, size = 0x4, scoped, tag = 'scoped memory for tpu_custom_call.1']
    %8 = vsyncpa [#allocation3], 0
    // Predicated region
    $region2: #{tpu_custom_call.1} parent=1 // pred_check
      _
    $region3: #{tpu_custom_call.1} parent=1 // pred_check_branch
      %10 = sbr.rel (0) target = $region5
    $region4: #{tpu_custom_call.1} parent=1 // pred_region
      _
    $region5: #{tpu_custom_call.1} parent=1 // pred_fallthru
      _
    // Predicated region
    $region6: #{tpu_custom_call.1} parent=1 // pred_check
      _
    $region7: #{tpu_custom_call.1} parent=1 // pred_check_branch
      %12 = sbr.rel (0) target = $region9
    $region8: #{tpu_custom_call.1} parent=1 // pred_region
      _
    $region9: #{tpu_custom_call.1} parent=1 // pred_fallthru
      _
    // Predicated region
    $region10: #{tpu_custom_call.1} parent=1 // pred_check
      _
    $region11: #{tpu_custom_call.1} parent=1 // pred_check_branch
      %14 = sbr.rel (0) target = $region13
    $region12: #{tpu_custom_call.1} parent=1 // pred_region
      _
    $region13: #{tpu_custom_call.1} parent=1 // pred_fallthru
      _
    %v15 = vld [vmem:[%s0] sm:$0x3]
    %v16 = vld [vmem:[%s1] sm:$0xff]
    %18 = vset.pattern.permute.xlu0 0
    %19 = vperm.xlu0 %18, %v16
    %v20 = vpop.permute.xlu0 %19
    %v22 = vlaneseq
    %v23 = vshrl.u32 %v22, 7
    %v24 = vsub.s32 0, %v23
    %v25 = vrot.slane %v15, %v24
    %v26 = vmul.f32 %v20, %v25
    %27 = vset.pattern.permute.xlu0 1
    %28 = vperm.xlu0 %27, %v16
    %v29 = vpop.permute.xlu0 %28
    %v31 = vlaneseq
    %v32 = vshrl.u32 %v31, 7
    %v33 = vsub.s32 1, %v32
    %v34 = vrot.slane %v15, %v33
    %v35 = vmul.f32 %v29, %v34
    %v36 = vadd.f32 %v26, %v35
    %v37 = vld [vmem:[%s2] sm:$0xff]
    %39 = vset.pattern.permute.xlu0 0
    %40 = vperm.xlu0 %39, %v37
    %v41 = vpop.permute.xlu0 %40
    %v43 = vadd.f32 %v36, %v41
    %v44 = vmul.f32 %v43, 0.01
    %v45 = vmax.f32 %v43, %v44
    %s46 = scalar_lea.vmem %s1, 8
    %v47 = vld [vmem:[%s46] sm:$0xff]
    %49 = vset.pattern.permute.xlu0 0
    %50 = vperm.xlu0 %49, %v47
    %v51 = vpop.permute.xlu0 %50
    %v53 = vlaneseq
    %v54 = vshrl.u32 %v53, 7
    %v55 = vsub.s32 0, %v54
    %v56 = vrot.slane %v45, %v55
    %v57 = vmul.f32 %v51, %v56
    %58 = vset.pattern.permute.xlu0 1
    %59 = vperm.xlu0 %58, %v47
    %v60 = vpop.permute.xlu0 %59
    %v62 = vlaneseq
    %v63 = vshrl.u32 %v62, 7
    %v64 = vsub.s32 1, %v63
    %v65 = vrot.slane %v45, %v64
    %v66 = vmul.f32 %v60, %v65
    %v67 = vadd.f32 %v57, %v66
    %68 = vset.pattern.permute.xlu0 2
    %69 = vperm.xlu0 %68, %v47
    %v70 = vpop.permute.xlu0 %69
    %v72 = vlaneseq
    %v73 = vshrl.u32 %v72, 7
    %v74 = vsub.s32 2, %v73
    %v75 = vrot.slane %v45, %v74
    %v76 = vmul.f32 %v70, %v75
    %v77 = vadd.f32 %v67, %v76
    %78 = vset.pattern.permute.xlu0 3
    %79 = vperm.xlu0 %78, %v47
    %v80 = vpop.permute.xlu0 %79
    %v82 = vlaneseq
    %v83 = vshrl.u32 %v82, 7
    %v84 = vsub.s32 3, %v83
    %v85 = vrot.slane %v45, %v84
    %v86 = vmul.f32 %v80, %v85
    %v87 = vadd.f32 %v77, %v86
    %88 = vset.pattern.permute.xlu0 4
    %89 = vperm.xlu0 %88, %v47
    %v90 = vpop.permute.xlu0 %89
    %v92 = vlaneseq
    %v93 = vshrl.u32 %v92, 7
    %v94 = vsub.s32 4, %v93
    %v95 = vrot.slane %v45, %v94
    %v96 = vmul.f32 %v90, %v95
    %v97 = vadd.f32 %v87, %v96
    %98 = vset.pattern.permute.xlu0 5
    %99 = vperm.xlu0 %98, %v47
    %v100 = vpop.permute.xlu0 %99
    %v102 = vlaneseq
    %v103 = vshrl.u32 %v102, 7
    %v104 = vsub.s32 5, %v103
    %v105 = vrot.slane %v45, %v104
    %v106 = vmul.f32 %v100, %v105
    %v107 = vadd.f32 %v97, %v106
    %108 = vset.pattern.permute.xlu0 6
    %109 = vperm.xlu0 %108, %v47
    %v110 = vpop.permute.xlu0 %109
    %v112 = vlaneseq
    %v113 = vshrl.u32 %v112, 7
    %v114 = vsub.s32 6, %v113
    %v115 = vrot.slane %v45, %v114
    %v116 = vmul.f32 %v110, %v115
    %v117 = vadd.f32 %v107, %v116
    %118 = vset.pattern.permute.xlu0 7
    %119 = vperm.xlu0 %118, %v47
    %v120 = vpop.permute.xlu0 %119
    %v122 = vlaneseq
    %v123 = vshrl.u32 %v122, 7
    %v124 = vsub.s32 7, %v123
    %v125 = vrot.slane %v45, %v124
    %v126 = vmul.f32 %v120, %v125
    %v127 = vadd.f32 %v117, %v126
    %s128 = scalar_lea.vmem %s2, 8
    %v129 = vld [vmem:[%s128] sm:$0xff]
    %131 = vset.pattern.permute.xlu0 0
    %132 = vperm.xlu0 %131, %v129
    %v133 = vpop.permute.xlu0 %132
    %v135 = vadd.f32 %v127, %v133
    %v136 = vmul.f32 %v135, 0.01
    %v137 = vmax.f32 %v135, %v136
    %s138 = scalar_lea.vmem %s1, 16
    %v139 = vld [vmem:[%s138] sm:$0xff]
    %141 = vset.pattern.permute.xlu0 0
    %142 = vperm.xlu0 %141, %v139
    %v143 = vpop.permute.xlu0 %142
    %v145 = vlaneseq
    %v146 = vshrl.u32 %v145, 7
    %v147 = vsub.s32 0, %v146
    %v148 = vrot.slane %v137, %v147
    %v149 = vmul.f32 %v143, %v148
    %150 = vset.pattern.permute.xlu0 1
    %151 = vperm.xlu0 %150, %v139
    %v152 = vpop.permute.xlu0 %151
    %v154 = vlaneseq
    %v155 = vshrl.u32 %v154, 7
    %v156 = vsub.s32 1, %v155
    %v157 = vrot.slane %v137, %v156
    %v158 = vmul.f32 %v152, %v157
    %v159 = vadd.f32 %v149, %v158
    %160 = vset.pattern.permute.xlu0 2
    %161 = vperm.xlu0 %160, %v139
    %v162 = vpop.permute.xlu0 %161
    %v164 = vlaneseq
    %v165 = vshrl.u32 %v164, 7
    %v166 = vsub.s32 2, %v165
    %v167 = vrot.slane %v137, %v166
    %v168 = vmul.f32 %v162, %v167
    %v169 = vadd.f32 %v159, %v168
    %170 = vset.pattern.permute.xlu0 3
    %171 = vperm.xlu0 %170, %v139
    %v172 = vpop.permute.xlu0 %171
    %v174 = vlaneseq
    %v175 = vshrl.u32 %v174, 7
    %v176 = vsub.s32 3, %v175
    %v177 = vrot.slane %v137, %v176
    %v178 = vmul.f32 %v172, %v177
    %v179 = vadd.f32 %v169, %v178
    %180 = vset.pattern.permute.xlu0 4
    %181 = vperm.xlu0 %180, %v139
    %v182 = vpop.permute.xlu0 %181
    %v184 = vlaneseq
    %v185 = vshrl.u32 %v184, 7
    %v186 = vsub.s32 4, %v185
    %v187 = vrot.slane %v137, %v186
    %v188 = vmul.f32 %v182, %v187
    %v189 = vadd.f32 %v179, %v188
    %190 = vset.pattern.permute.xlu0 5
    %191 = vperm.xlu0 %190, %v139
    %v192 = vpop.permute.xlu0 %191
    %v194 = vlaneseq
    %v195 = vshrl.u32 %v194, 7
    %v196 = vsub.s32 5, %v195
    %v197 = vrot.slane %v137, %v196
    %v198 = vmul.f32 %v192, %v197
    %v199 = vadd.f32 %v189, %v198
    %200 = vset.pattern.permute.xlu0 6
    %201 = vperm.xlu0 %200, %v139
    %v202 = vpop.permute.xlu0 %201
    %v204 = vlaneseq
    %v205 = vshrl.u32 %v204, 7
    %v206 = vsub.s32 6, %v205
    %v207 = vrot.slane %v137, %v206
    %v208 = vmul.f32 %v202, %v207
    %v209 = vadd.f32 %v199, %v208
    %210 = vset.pattern.permute.xlu0 7
    %211 = vperm.xlu0 %210, %v139
    %v212 = vpop.permute.xlu0 %211
    %v214 = vlaneseq
    %v215 = vshrl.u32 %v214, 7
    %v216 = vsub.s32 7, %v215
    %v217 = vrot.slane %v137, %v216
    %v218 = vmul.f32 %v212, %v217
    %v219 = vadd.f32 %v209, %v218
    %s220 = scalar_lea.vmem %s2, 16
    %v221 = vld [vmem:[%s220] sm:$0xff]
    %223 = vset.pattern.permute.xlu0 0
    %224 = vperm.xlu0 %223, %v221
    %v225 = vpop.permute.xlu0 %224
    %v227 = vadd.f32 %v219, %v225
    %v228 = vmul.f32 %v227, 0.01
    %v229 = vmax.f32 %v227, %v228
    %v230 = vadd.f32 %v45, %v229
    %s231 = scalar_lea.vmem %s1, 24
    %v232 = vld [vmem:[%s231] sm:$0xff]
    %234 = vset.pattern.permute.xlu0 0
    %235 = vperm.xlu0 %234, %v232
    %v236 = vpop.permute.xlu0 %235
    %v238 = vlaneseq
    %v239 = vshrl.u32 %v238, 7
    %v240 = vsub.s32 0, %v239
    %v241 = vrot.slane %v230, %v240
    %v242 = vmul.f32 %v236, %v241
    %243 = vset.pattern.permute.xlu0 1
    %244 = vperm.xlu0 %243, %v232
    %v245 = vpop.permute.xlu0 %244
    %v247 = vlaneseq
    %v248 = vshrl.u32 %v247, 7
    %v249 = vsub.s32 1, %v248
    %v250 = vrot.slane %v230, %v249
    %v251 = vmul.f32 %v245, %v250
    %v252 = vadd.f32 %v242, %v251
    %253 = vset.pattern.permute.xlu0 2
    %254 = vperm.xlu0 %253, %v232
    %v255 = vpop.permute.xlu0 %254
    %v257 = vlaneseq
    %v258 = vshrl.u32 %v257, 7
    %v259 = vsub.s32 2, %v258
    %v260 = vrot.slane %v230, %v259
    %v261 = vmul.f32 %v255, %v260
    %v262 = vadd.f32 %v252, %v261
    %263 = vset.pattern.permute.xlu0 3
    %264 = vperm.xlu0 %263, %v232
    %v265 = vpop.permute.xlu0 %264
    %v267 = vlaneseq
    %v268 = vshrl.u32 %v267, 7
    %v269 = vsub.s32 3, %v268
    %v270 = vrot.slane %v230, %v269
    %v271 = vmul.f32 %v265, %v270
    %v272 = vadd.f32 %v262, %v271
    %273 = vset.pattern.permute.xlu0 4
    %274 = vperm.xlu0 %273, %v232
    %v275 = vpop.permute.xlu0 %274
    %v277 = vlaneseq
    %v278 = vshrl.u32 %v277, 7
    %v279 = vsub.s32 4, %v278
    %v280 = vrot.slane %v230, %v279
    %v281 = vmul.f32 %v275, %v280
    %v282 = vadd.f32 %v272, %v281
    %283 = vset.pattern.permute.xlu0 5
    %284 = vperm.xlu0 %283, %v232
    %v285 = vpop.permute.xlu0 %284
    %v287 = vlaneseq
    %v288 = vshrl.u32 %v287, 7
    %v289 = vsub.s32 5, %v288
    %v290 = vrot.slane %v230, %v289
    %v291 = vmul.f32 %v285, %v290
    %v292 = vadd.f32 %v282, %v291
    %293 = vset.pattern.permute.xlu0 6
    %294 = vperm.xlu0 %293, %v232
    %v295 = vpop.permute.xlu0 %294
    %v297 = vlaneseq
    %v298 = vshrl.u32 %v297, 7
    %v299 = vsub.s32 6, %v298
    %v300 = vrot.slane %v230, %v299
    %v301 = vmul.f32 %v295, %v300
    %v302 = vadd.f32 %v292, %v301
    %303 = vset.pattern.permute.xlu0 7
    %304 = vperm.xlu0 %303, %v232
    %v305 = vpop.permute.xlu0 %304
    %v307 = vlaneseq
    %v308 = vshrl.u32 %v307, 7
    %v309 = vsub.s32 7, %v308
    %v310 = vrot.slane %v230, %v309
    %v311 = vmul.f32 %v305, %v310
    %v312 = vadd.f32 %v302, %v311
    %s313 = scalar_lea.vmem %s2, 24
    %v314 = vld [vmem:[%s313] sm:$0xff]
    %316 = vset.pattern.permute.xlu0 0
    %317 = vperm.xlu0 %316, %v314
    %v318 = vpop.permute.xlu0 %317
    %v320 = vadd.f32 %v312, %v318
    %v321 = vmul.f32 %v320, 0.01
    %v322 = vmax.f32 %v320, %v321
    %s323 = scalar_lea.vmem %s1, 32
    %v324 = vld [vmem:[%s323] sm:$0xff]
    %326 = vset.pattern.permute.xlu0 0
    %327 = vperm.xlu0 %326, %v324
    %v328 = vpop.permute.xlu0 %327
    %v330 = vlaneseq
    %v331 = vshrl.u32 %v330, 7
    %v332 = vsub.s32 0, %v331
    %v333 = vrot.slane %v322, %v332
    %v334 = vmul.f32 %v328, %v333
    %335 = vset.pattern.permute.xlu0 1
    %336 = vperm.xlu0 %335, %v324
    %v337 = vpop.permute.xlu0 %336
    %v339 = vlaneseq
    %v340 = vshrl.u32 %v339, 7
    %v341 = vsub.s32 1, %v340
    %v342 = vrot.slane %v322, %v341
    %v343 = vmul.f32 %v337, %v342
    %v344 = vadd.f32 %v334, %v343
    %345 = vset.pattern.permute.xlu0 2
    %346 = vperm.xlu0 %345, %v324
    %v347 = vpop.permute.xlu0 %346
    %v349 = vlaneseq
    %v350 = vshrl.u32 %v349, 7
    %v351 = vsub.s32 2, %v350
    %v352 = vrot.slane %v322, %v351
    %v353 = vmul.f32 %v347, %v352
    %v354 = vadd.f32 %v344, %v353
    %355 = vset.pattern.permute.xlu0 3
    %356 = vperm.xlu0 %355, %v324
    %v357 = vpop.permute.xlu0 %356
    %v359 = vlaneseq
    %v360 = vshrl.u32 %v359, 7
    %v361 = vsub.s32 3, %v360
    %v362 = vrot.slane %v322, %v361
    %v363 = vmul.f32 %v357, %v362
    %v364 = vadd.f32 %v354, %v363
    %365 = vset.pattern.permute.xlu0 4
    %366 = vperm.xlu0 %365, %v324
    %v367 = vpop.permute.xlu0 %366
    %v369 = vlaneseq
    %v370 = vshrl.u32 %v369, 7
    %v371 = vsub.s32 4, %v370
    %v372 = vrot.slane %v322, %v371
    %v373 = vmul.f32 %v367, %v372
    %v374 = vadd.f32 %v364, %v373
    %375 = vset.pattern.permute.xlu0 5
    %376 = vperm.xlu0 %375, %v324
    %v377 = vpop.permute.xlu0 %376
    %v379 = vlaneseq
    %v380 = vshrl.u32 %v379, 7
    %v381 = vsub.s32 5, %v380
    %v382 = vrot.slane %v322, %v381
    %v383 = vmul.f32 %v377, %v382
    %v384 = vadd.f32 %v374, %v383
    %385 = vset.pattern.permute.xlu0 6
    %386 = vperm.xlu0 %385, %v324
    %v387 = vpop.permute.xlu0 %386
    %v389 = vlaneseq
    %v390 = vshrl.u32 %v389, 7
    %v391 = vsub.s32 6, %v390
    %v392 = vrot.slane %v322, %v391
    %v393 = vmul.f32 %v387, %v392
    %v394 = vadd.f32 %v384, %v393
    %395 = vset.pattern.permute.xlu0 7
    %396 = vperm.xlu0 %395, %v324
    %v397 = vpop.permute.xlu0 %396
    %v399 = vlaneseq
    %v400 = vshrl.u32 %v399, 7
    %v401 = vsub.s32 7, %v400
    %v402 = vrot.slane %v322, %v401
    %v403 = vmul.f32 %v397, %v402
    %v404 = vadd.f32 %v394, %v403
    %s405 = scalar_lea.vmem %s2, 32
    %v406 = vld [vmem:[%s405] sm:$0xff]
    %408 = vset.pattern.permute.xlu0 0
    %409 = vperm.xlu0 %408, %v406
    %v410 = vpop.permute.xlu0 %409
    %v412 = vadd.f32 %v404, %v410
    %v413 = vmul.f32 %v412, 0.01
    %v414 = vmax.f32 %v412, %v413
    %v415 = vadd.f32 %v230, %v414
    %s416 = scalar_lea.vmem %s1, 40
    %v417 = vld [vmem:[%s416] sm:$0xff]
    %419 = vset.pattern.permute.xlu0 0
    %420 = vperm.xlu0 %419, %v417
    %v421 = vpop.permute.xlu0 %420
    %v423 = vlaneseq
    %v424 = vshrl.u32 %v423, 7
    %v425 = vsub.s32 0, %v424
    %v426 = vrot.slane %v415, %v425
    %v427 = vmul.f32 %v421, %v426
    %428 = vset.pattern.permute.xlu0 1
    %429 = vperm.xlu0 %428, %v417
    %v430 = vpop.permute.xlu0 %429
    %v432 = vlaneseq
    %v433 = vshrl.u32 %v432, 7
    %v434 = vsub.s32 1, %v433
    %v435 = vrot.slane %v415, %v434
    %v436 = vmul.f32 %v430, %v435
    %v437 = vadd.f32 %v427, %v436
    %438 = vset.pattern.permute.xlu0 2
    %439 = vperm.xlu0 %438, %v417
    %v440 = vpop.permute.xlu0 %439
    %v442 = vlaneseq
    %v443 = vshrl.u32 %v442, 7
    %v444 = vsub.s32 2, %v443
    %v445 = vrot.slane %v415, %v444
    %v446 = vmul.f32 %v440, %v445
    %v447 = vadd.f32 %v437, %v446
    %448 = vset.pattern.permute.xlu0 3
    %449 = vperm.xlu0 %448, %v417
    %v450 = vpop.permute.xlu0 %449
    %v452 = vlaneseq
    %v453 = vshrl.u32 %v452, 7
    %v454 = vsub.s32 3, %v453
    %v455 = vrot.slane %v415, %v454
    %v456 = vmul.f32 %v450, %v455
    %v457 = vadd.f32 %v447, %v456
    %458 = vset.pattern.permute.xlu0 4
    %459 = vperm.xlu0 %458, %v417
    %v460 = vpop.permute.xlu0 %459
    %v462 = vlaneseq
    %v463 = vshrl.u32 %v462, 7
    %v464 = vsub.s32 4, %v463
    %v465 = vrot.slane %v415, %v464
    %v466 = vmul.f32 %v460, %v465
    %v467 = vadd.f32 %v457, %v466
    %468 = vset.pattern.permute.xlu0 5
    %469 = vperm.xlu0 %468, %v417
    %v470 = vpop.permute.xlu0 %469
    %v472 = vlaneseq
    %v473 = vshrl.u32 %v472, 7
    %v474 = vsub.s32 5, %v473
    %v475 = vrot.slane %v415, %v474
    %v476 = vmul.f32 %v470, %v475
    %v477 = vadd.f32 %v467, %v476
    %478 = vset.pattern.permute.xlu0 6
    %479 = vperm.xlu0 %478, %v417
    %v480 = vpop.permute.xlu0 %479
    %v482 = vlaneseq
    %v483 = vshrl.u32 %v482, 7
    %v484 = vsub.s32 6, %v483
    %v485 = vrot.slane %v415, %v484
    %v486 = vmul.f32 %v480, %v485
    %v487 = vadd.f32 %v477, %v486
    %488 = vset.pattern.permute.xlu0 7
    %489 = vperm.xlu0 %488, %v417
    %v490 = vpop.permute.xlu0 %489
    %v492 = vlaneseq
    %v493 = vshrl.u32 %v492, 7
    %v494 = vsub.s32 7, %v493
    %v495 = vrot.slane %v415, %v494
    %v496 = vmul.f32 %v490, %v495
    %v497 = vadd.f32 %v487, %v496
    %s498 = scalar_lea.vmem %s2, 40
    %v499 = vld [vmem:[%s498] sm:$0xff]
    %501 = vset.pattern.permute.xlu0 0
    %502 = vperm.xlu0 %501, %v499
    %v503 = vpop.permute.xlu0 %502
    %v505 = vadd.f32 %v497, %v503
    %v507 = vrot.slane %v505, 7
    %v509 = vadd.f32 %v15, %v507
    %510 = vst [vmem:[#allocation2 - $0x1] sm:$0x2] %v509
    // Predicated region
    $region14: #{tpu_custom_call.1} parent=1 // pred_check
      _
    $region15: #{tpu_custom_call.1} parent=1 // pred_check_branch
      %512 = sbr.rel (0) target = $region17
    $region16: #{tpu_custom_call.1} parent=1 // pred_region
      %s514 = ssub.s32 16, 16
      %515 = vsyncadd [#allocation3], %s514
      %s517 = sshll.u32 [#allocation2], 4
      %s518 = int_to_ptr.vmem [resolvable:$true] %s517
      %520 = dma.vmem_to_hbm [thread:$0]  %s518, 16, %s3, [#allocation3]
    $region17: #{tpu_custom_call.1} parent=1 // pred_fallthru
      _
    // Predicated region
    $region18: #{tpu_custom_call.1} parent=1 // pred_check
      _
    $region19: #{tpu_custom_call.1} parent=1 // pred_check_branch
      %522 = sbr.rel (0) target = $region21
    $region20: #{tpu_custom_call.1} parent=1 // pred_region
      %523 = dma.done [#allocation3], 16
    $region21: #{tpu_custom_call.1} parent=1 // pred_fallthru
      _
    %524 = vsyncpa [#allocation3], 1

</llo_original>
